<compile_context>
chip_gen: v7x
topology: tpu7x:2x2x1
jax: 0.10.0
libtpu: 0.0.40
codegen_flags: <defaults>
</compile_context>

<pallas_src>
import numpy as np
import jax
import jax.numpy as jnp
from jax.experimental import pallas as pl
from jax.experimental.pallas import tpu as pltpu


# ----------------------------- model config ---------------------------------
IN_FEATURES = 128
OUT_CLASSES = 4
COMPLEXITY = 2
LATENT_SPACE = 16
KERNEL_BASE = 5

K1, S1 = KERNEL_BASE + 2, KERNEL_BASE + 1          # Conv1d(1 -> C1): k=7, s=6
K2, S2 = KERNEL_BASE, KERNEL_BASE - 1               # Conv1d(C1 -> C2): k=5, s=4
C1 = COMPLEXITY * 1                                 # 2
C2 = COMPLEXITY * 2                                 # 4

L1 = (IN_FEATURES - K1) // S1 + 1                   # 21
L2 = (L1 - K2) // S2 + 1                            # 5  (latent_size)
LATENT_SIZE = L2
FLAT = C2 * LATENT_SIZE                             # 20

LT1 = (L2 - 1) * S2 + K2                            # 21
LT2 = (LT1 - 1) * S1 + K1                           # 127
L_OUT = IN_FEATURES                                 # Upsample target: 128


# -------------------- conv -> dense matrix construction ---------------------
def conv1d_to_matrix(w, l_in, stride):
    """w: (C_out, C_in, K) -> A: (C_in*l_in, C_out*l_out), y_flat = x_flat @ A."""
    c_out, c_in, k = w.shape
    l_out = (l_in - k) // stride + 1
    a = np.zeros((c_in * l_in, c_out * l_out), dtype=np.float32)
    for co in range(c_out):
        for ci in range(c_in):
            for t in range(l_out):
                for kk in range(k):
                    a[ci * l_in + t * stride + kk, co * l_out + t] += w[co, ci, kk]
    return a


def convtranspose1d_to_matrix(w, l_in, stride):
    """w: (C_in, C_out, K) -> B: (C_in*l_in, C_out*l_out), y_flat = x_flat @ B."""
    c_in, c_out, k = w.shape
    l_out = (l_in - 1) * stride + k
    b = np.zeros((c_in * l_in, c_out * l_out), dtype=np.float32)
    for ci in range(c_in):
        for co in range(c_out):
            for t in range(l_in):
                for kk in range(k):
                    b[ci * l_in + t, co * l_out + t * stride + kk] += w[ci, co, kk]
    return b


def upsample_nearest_matrix(l_in, l_out):
    u = np.zeros((l_in, l_out), dtype=np.float32)
    for i in range(l_out):
        src = int(np.floor(i * l_in / l_out))
        u[src, i] = 1.0
    return u


# ------------------------------ Pallas kernel --------------------------------
def cae_fwd_kernel(x_ref, a1_ref, b1_ref, a2_ref, b2_ref,
                   wl1c_ref, bl1c_ref, wl2_ref, bl2_ref,
                   t1_ref, bt1_ref, t2u_ref, bt2u_ref,
                   recon_ref, logp_ref):
    f32 = jnp.float32
    bf16 = jnp.bfloat16
    x = x_ref[...]                                                  # (TB, 128) bf16

    # --- encode ---
    # Conv1d(1->C1, k7, s6) + ReLU
    h1 = jnp.maximum(
        jnp.dot(x, a1_ref[...], preferred_element_type=f32) + b1_ref[...], 0.0)
    # Conv1d(C1->C2, k5, s4) + Tanh   (Dropout1d = identity in eval)
    h2 = jnp.tanh(
        jnp.dot(h1.astype(bf16), a2_ref[...], preferred_element_type=f32)
        + b2_ref[...])
    # Fused l1 | lc matmul -> slice code / classifier logits
    cl = (jnp.dot(h2.astype(bf16), wl1c_ref[...], preferred_element_type=f32)
          + bl1c_ref[...])
    code = jnp.tanh(cl[:, :LATENT_SPACE])
    logits = cl[:, LATENT_SPACE:LATENT_SPACE + OUT_CLASSES]
    m = jnp.max(logits, axis=1, keepdims=True)
    sh = logits - m
    logp_ref[...] = sh - jnp.log(jnp.sum(jnp.exp(sh), axis=1, keepdims=True))

    # --- decode ---
    # l2 + relu (relu after reshape == relu on flat)
    d0 = jnp.maximum(
        jnp.dot(code.astype(bf16), wl2_ref[...], preferred_element_type=f32)
        + bl2_ref[...], 0.0)
    # ConvTranspose1d(C2->C1, k5, s4) + ReLU   (Dropout1d = identity)
    d1 = jnp.maximum(
        jnp.dot(d0.astype(bf16), t1_ref[...], preferred_element_type=f32)
        + bt1_ref[...], 0.0)
    # ConvTranspose1d(C1->1, k7, s6) + Tanh, Upsample folded into T2U.
    # Output stored as bf16 (dominant HBM stream halved vs f32).
    recon_ref[...] = jnp.tanh(
        jnp.dot(d1.astype(bf16), t2u_ref[...], preferred_element_type=f32)
        + bt2u_ref[...]).astype(recon_ref.dtype)


_PARAM_ORDER = ("A1", "b1v", "A2", "b2v", "Wl1c", "bl1c",
                "Wl2", "bl2", "T1", "bt1v", "T2U", "bt2U")


def _round_up(x, m):
    return ((x + m - 1) // m) * m


def _choose_tiling(bs, tile_b):
    """Pick (bs_pad, tile_b, n_tiles).

    Constraints / goals:
      * tile is a multiple of 16 rows (bf16 sublane packing);
      * never pad the batch up by a whole extra tile (waste < 16 rows/tile);
      * grid length >= 2 whenever the batch allows, so the 'parallel' batch
        axis can shard across both TensorCores on v7x megacore.
    """
    align = 16
    bs_a = _round_up(max(bs, 1), align)
    if bs_a < 2 * align:                       # too small to split usefully
        return bs_a, bs_a, 1
    n = max(2, pl.cdiv(bs_a, max(tile_b, align)))
    tb = _round_up(pl.cdiv(bs_a, n), align)
    n = max(2, pl.cdiv(bs_a, tb))
    return n * tb, tb, n


def cae_forward(x_ncl, params, tile_b=2048):
    """x_ncl: (bs, 1, IN_FEATURES) -> (recon (bs,1,128) bf16, log_softmax (bs,4) f32).

    recon is returned in bf16 (HBM-traffic lever); upcast outside if f32 is
    truly required by the caller.
    """
    bs = x_ncl.shape[0]
    x2d = x_ncl.reshape(bs, IN_FEATURES).astype(jnp.bfloat16)

    bs_pad, tb, n_tiles = _choose_tiling(bs, tile_b)
    if bs_pad != bs:
        x2d = jnp.pad(x2d, ((0, bs_pad - bs), (0, 0)))
    grid = (n_tiles,)

    weights = tuple(params[k] for k in _PARAM_ORDER)
    # Weights/biases: full-array blocks, constant index_map -> resident in VMEM.
    w_specs = [pl.BlockSpec(w.shape, lambda i: (0, 0)) for w in weights]

    flops_row = 2 * (128 * 42 + 42 * 20 + 20 * 20 + 16 * 20 + 20 * 42 + 42 * 128)
    weight_bytes = sum(int(np.prod(w.shape)) * w.dtype.itemsize for w in weights)
    cost = pl.CostEstimate(
        flops=bs_pad * flops_row,
        transcendentals=bs_pad * (FLAT + LATENT_SPACE + OUT_CLASSES + L_OUT),
        bytes_accessed=bs_pad * (IN_FEATURES * 2 + L_OUT * 2 + OUT_CLASSES * 4)
                       + weight_bytes)

    # Explicit scoped-VMEM limit so v5e's 16 MiB default never binds.  At the
    # default tile_b=2048 the double-buffered tiles + lane-padded f32
    # intermediates need ~12-16 MiB.  For v6e large-batch sweeps (tile_b up to
    # 8192) raise this toward 96 MiB; keep <= ~48 MiB on v7x (64 MiB physical).
    vmem_limit = 32 * 1024 * 1024

    recon2d, logp = pl.pallas_call(
        cae_fwd_kernel,
        out_shape=(jax.ShapeDtypeStruct((bs_pad, L_OUT), jnp.bfloat16),
                   jax.ShapeDtypeStruct((bs_pad, OUT_CLASSES), jnp.float32)),
        grid=grid,
        in_specs=[pl.BlockSpec((tb, IN_FEATURES), lambda i: (i, 0))] + w_specs,
        out_specs=(pl.BlockSpec((tb, L_OUT), lambda i: (i, 0)),
                   pl.BlockSpec((tb, OUT_CLASSES), lambda i: (i, 0))),
        compiler_params=pltpu.CompilerParams(
            dimension_semantics=("parallel",),
            vmem_limit_bytes=vmem_limit),
        cost_estimate=cost,
    )(x2d, *weights)

    return recon2d[:bs].reshape(bs, 1, L_OUT), logp[:bs]


# ----------------------- deterministic parameter init ------------------------
def init_params(key):
    def uni(k, shape, fan_in):
        bound = 1.0 / np.sqrt(fan_in)
        return jax.random.uniform(k, shape, jnp.float32, -bound, bound)

    ks = jax.random.split(key, 16)
    # conv weights (PyTorch shapes)
    w_c1 = uni(ks[0], (C1, 1, K1), 1 * K1)        # Conv1d(1, C1, 7, 6)
    b_c1 = uni(ks[1], (C1,), 1 * K1)
    w_c2 = uni(ks[2], (C2, C1, K2), C1 * K2)      # Conv1d(C1, C2, 5, 4)
    b_c2 = uni(ks[3], (C2,), C1 * K2)
    w_t1 = uni(ks[4], (C2, C1, K2), C2 * K2)      # ConvTranspose1d(C2, C1, 5, 4)
    b_t1 = uni(ks[5], (C1,), C2 * K2)
    w_t2 = uni(ks[6], (C1, 1, K1), C1 * K1)       # ConvTranspose1d(C1, 1, 7, 6)
    b_t2 = uni(ks[7], (1,), C1 * K1)
    # linear layers, stored as (in, out)
    w_l1 = uni(ks[8], (FLAT, LATENT_SPACE), FLAT)
    b_l1 = uni(ks[9], (LATENT_SPACE,), FLAT)
    w_l2 = uni(ks[10], (LATENT_SPACE, FLAT), LATENT_SPACE)
    b_l2 = uni(ks[11], (FLAT,), LATENT_SPACE)
    w_lc = uni(ks[12], (FLAT, OUT_CLASSES), FLAT)
    b_lc = uni(ks[13], (OUT_CLASSES,), FLAT)

    npa = lambda a: np.asarray(a, dtype=np.float32)

    A1 = conv1d_to_matrix(npa(w_c1), IN_FEATURES, S1)            # (128, 42)
    A2 = conv1d_to_matrix(npa(w_c2), L1, S2)                     # (42, 20)
    T1 = convtranspose1d_to_matrix(npa(w_t1), L2, S2)            # (20, 42)
    T2 = convtranspose1d_to_matrix(npa(w_t2), LT1, S1)           # (42, 127)
    U = upsample_nearest_matrix(LT2, L_OUT)                      # (127, 128)

    # Fold Upsample(nearest) through the final tanh.  Exact only because U is
    # a pure column-selection matrix (exactly one 1 per output column).
    assert np.all(U.sum(axis=0) == 1.0) and np.all((U == 0.0) | (U == 1.0)), \
        "Upsample folding requires a one-hot column-selection matrix"
    T2U = T2 @ U                                                 # (42, 128)
    bt2U = np.repeat(npa(b_t2), LT2)[None, :] @ U                # (1, 128)

    # Fuse l1 and lc (both consume the flattened conv features).
    Wl1c = np.concatenate([npa(w_l1), npa(w_lc)], axis=1)        # (20, 20)
    bl1c = np.concatenate([npa(b_l1), npa(b_lc)])[None, :]       # (1, 20)

    bf16 = jnp.bfloat16
    f32 = jnp.float32
    # Operator matrices stay bf16 (native MXU path).  If bit-closer parity to
    # a true-f32 PyTorch forward is ever needed, keep A1/T2U in f32 (tiny).
    params = {
        "A1": jnp.asarray(A1, bf16),
        "b1v": jnp.asarray(np.repeat(npa(b_c1), L1)[None, :], f32),
        "A2": jnp.asarray(A2, bf16),
        "b2v": jnp.asarray(np.repeat(npa(b_c2), L2)[None, :], f32),
        "Wl1c": jnp.asarray(Wl1c, bf16),
        "bl1c": jnp.asarray(bl1c, f32),
        "Wl2": jnp.asarray(npa(w_l2), bf16),
        "bl2": jnp.asarray(npa(b_l2)[None, :], f32),
        "T1": jnp.asarray(T1, bf16),
        "bt1v": jnp.asarray(np.repeat(npa(b_t1), LT1)[None, :], f32),
        "T2U": jnp.asarray(T2U, bf16),
        "bt2U": jnp.asarray(bt2U, f32),
    }
    return params


def reference_forward(x_ncl, p):
    """Pure-JAX reference mirroring the kernel's bf16-matmul / f32-accumulate math."""
    bs = x_ncl.shape[0]
    bf16, f32 = jnp.bfloat16, jnp.float32
    dot = lambda a, b: jnp.dot(a.astype(bf16), b, preferred_element_type=f32)

    x = x_ncl.reshape(bs, IN_FEATURES).astype(bf16)
    h1 = jnp.maximum(dot(x, p["A1"]) + p["b1v"], 0.0)
    h2 = jnp.tanh(dot(h1, p["A2"]) + p["b2v"])
    cl = dot(h2, p["Wl1c"]) + p["bl1c"]
    code = jnp.tanh(cl[:, :LATENT_SPACE])
    logits = cl[:, LATENT_SPACE:LATENT_SPACE + OUT_CLASSES]
    logp = jax.nn.log_softmax(logits, axis=1)
    d0 = jnp.maximum(dot(code, p["Wl2"]) + p["bl2"], 0.0)
    d1 = jnp.maximum(dot(d0, p["T1"]) + p["bt1v"], 0.0)
    recon = jnp.tanh(dot(d1, p["T2U"]) + p["bt2U"])
    return recon.reshape(bs, 1, L_OUT), logp


if __name__ == "__main__":
    key = jax.random.PRNGKey(0)
    k_param, k_x = jax.random.split(key)
    params = init_params(k_param)

    # bs=2: tiny single-tile path; bs=40: multi-tile path (grid >= 2, padding).
    for bs in (2, 40):
        kx = jax.random.fold_in(k_x, bs)
        x = jax.random.normal(kx, (bs, 1, IN_FEATURES), dtype=jnp.float32)

        recon, logp = cae_forward(x, params)
        recon = jax.block_until_ready(recon)
        logp = jax.block_until_ready(logp)

        assert recon.shape == (bs, 1, IN_FEATURES), recon.shape
        assert logp.shape == (bs, OUT_CLASSES), logp.shape

        ref_recon, ref_logp = reference_forward(x, params)
        # recon is bf16 out of the kernel -> compare in f32 with bf16-level atol.
        np.testing.assert_allclose(
            np.asarray(jnp.asarray(recon, jnp.float32)),
            np.asarray(jnp.asarray(ref_recon, jnp.float32)),
            rtol=1e-2, atol=1e-2)
        np.testing.assert_allclose(np.asarray(logp), np.asarray(ref_logp),
                                   rtol=1e-3, atol=1e-3)

    print("KERNEL_OK")
</pallas_src>

<mosaic_0001>
module attributes {stable_mosaic.version = 11 : i64} {
  func.func @cae_fwd_kernel(%arg0: i32, %arg1: memref<16x128xbf16, #tpu.memory_space<vmem>>, %arg2: memref<128x42xbf16, #tpu.memory_space<vmem>>, %arg3: memref<1x42xf32, #tpu.memory_space<vmem>>, %arg4: memref<42x20xbf16, #tpu.memory_space<vmem>>, %arg5: memref<1x20xf32, #tpu.memory_space<vmem>>, %arg6: memref<20x20xbf16, #tpu.memory_space<vmem>>, %arg7: memref<1x20xf32, #tpu.memory_space<vmem>>, %arg8: memref<16x20xbf16, #tpu.memory_space<vmem>>, %arg9: memref<1x20xf32, #tpu.memory_space<vmem>>, %arg10: memref<20x42xbf16, #tpu.memory_space<vmem>>, %arg11: memref<1x42xf32, #tpu.memory_space<vmem>>, %arg12: memref<42x128xbf16, #tpu.memory_space<vmem>>, %arg13: memref<1x128xf32, #tpu.memory_space<vmem>>, %arg14: memref<16x128xbf16, #tpu.memory_space<vmem>>, %arg15: memref<16x4xf32, #tpu.memory_space<vmem>>) attributes {dimension_semantics = [#tpu.dimension_semantics<parallel>], iteration_bounds = array<i64: 1>, scalar_prefetch = 0 : i64, scratch_operands = 0 : i64, tpu.core_type = #tpu.core_type<tc>, window_params = [{transform_indices = @transform_0, window_bounds = array<i64: 16, 128>}, {pipeline_mode = #tpu.pipeline_mode<synchronous>, transform_indices = @transform_1, window_bounds = array<i64: 128, 42>}, {pipeline_mode = #tpu.pipeline_mode<synchronous>, transform_indices = @transform_2, window_bounds = array<i64: 1, 42>}, {pipeline_mode = #tpu.pipeline_mode<synchronous>, transform_indices = @transform_3, window_bounds = array<i64: 42, 20>}, {pipeline_mode = #tpu.pipeline_mode<synchronous>, transform_indices = @transform_4, window_bounds = array<i64: 1, 20>}, {pipeline_mode = #tpu.pipeline_mode<synchronous>, transform_indices = @transform_5, window_bounds = array<i64: 20, 20>}, {pipeline_mode = #tpu.pipeline_mode<synchronous>, transform_indices = @transform_6, window_bounds = array<i64: 1, 20>}, {pipeline_mode = #tpu.pipeline_mode<synchronous>, transform_indices = @transform_7, window_bounds = array<i64: 16, 20>}, {pipeline_mode = #tpu.pipeline_mode<synchronous>, transform_indices = @transform_8, window_bounds = array<i64: 1, 20>}, {pipeline_mode = #tpu.pipeline_mode<synchronous>, transform_indices = @transform_9, window_bounds = array<i64: 20, 42>}, {pipeline_mode = #tpu.pipeline_mode<synchronous>, transform_indices = @transform_10, window_bounds = array<i64: 1, 42>}, {pipeline_mode = #tpu.pipeline_mode<synchronous>, transform_indices = @transform_11, window_bounds = array<i64: 42, 128>}, {pipeline_mode = #tpu.pipeline_mode<synchronous>, transform_indices = @transform_12, window_bounds = array<i64: 1, 128>}, {transform_indices = @transform_13, window_bounds = array<i64: 16, 128>}, {transform_indices = @transform_14, window_bounds = array<i64: 16, 4>}]} {
    %c0 = arith.constant 0 : index
    %c0_0 = arith.constant 0 : index
    %0 = vector.load %arg1[%c0, %c0_0] : memref<16x128xbf16, #tpu.memory_space<vmem>>, vector<16x128xbf16>
    %c0_1 = arith.constant 0 : index
    %c0_2 = arith.constant 0 : index
    %1 = vector.load %arg2[%c0_1, %c0_2] : memref<128x42xbf16, #tpu.memory_space<vmem>>, vector<128x42xbf16>
    %cst = arith.constant dense<0.000000e+00> : vector<16x42xf32>
    %2 = tpu.matmul %0, %1, %cst {dimension_numbers = #tpu.dot_dimension_numbers<[1], [0], [0], [1], [0, 0, 1, 1], [], []>} : vector<16x128xbf16>, vector<128x42xbf16>, vector<16x42xf32> -> vector<16x42xf32>
    %c0_3 = arith.constant 0 : index
    %c0_4 = arith.constant 0 : index
    %3 = vector.load %arg3[%c0_3, %c0_4] : memref<1x42xf32, #tpu.memory_space<vmem>>, vector<1x42xf32>
    %4 = vector.broadcast %3 : vector<1x42xf32> to vector<16x42xf32>
    %5 = arith.addf %2, %4 : vector<16x42xf32>
    %cst_5 = arith.constant 0.000000e+00 : f32
    %6 = vector.broadcast %cst_5 : f32 to vector<16x42xf32>
    %7 = arith.maximumf %5, %6 : vector<16x42xf32>
    %8 = arith.truncf %7 : vector<16x42xf32> to vector<16x42xbf16>
    %c0_6 = arith.constant 0 : index
    %c0_7 = arith.constant 0 : index
    %9 = vector.load %arg4[%c0_6, %c0_7] : memref<42x20xbf16, #tpu.memory_space<vmem>>, vector<42x20xbf16>
    %cst_8 = arith.constant dense<0.000000e+00> : vector<16x20xf32>
    %10 = tpu.matmul %8, %9, %cst_8 {dimension_numbers = #tpu.dot_dimension_numbers<[1], [0], [0], [1], [0, 0, 1, 1], [], []>} : vector<16x42xbf16>, vector<42x20xbf16>, vector<16x20xf32> -> vector<16x20xf32>
    %c0_9 = arith.constant 0 : index
    %c0_10 = arith.constant 0 : index
    %11 = vector.load %arg5[%c0_9, %c0_10] : memref<1x20xf32, #tpu.memory_space<vmem>>, vector<1x20xf32>
    %12 = vector.broadcast %11 : vector<1x20xf32> to vector<16x20xf32>
    %13 = arith.addf %10, %12 : vector<16x20xf32>
    %14 = math.tanh %13 : vector<16x20xf32>
    %15 = arith.truncf %14 : vector<16x20xf32> to vector<16x20xbf16>
    %c0_11 = arith.constant 0 : index
    %c0_12 = arith.constant 0 : index
    %16 = vector.load %arg6[%c0_11, %c0_12] : memref<20x20xbf16, #tpu.memory_space<vmem>>, vector<20x20xbf16>
    %cst_13 = arith.constant dense<0.000000e+00> : vector<16x20xf32>
    %17 = tpu.matmul %15, %16, %cst_13 {dimension_numbers = #tpu.dot_dimension_numbers<[1], [0], [0], [1], [0, 0, 1, 1], [], []>} : vector<16x20xbf16>, vector<20x20xbf16>, vector<16x20xf32> -> vector<16x20xf32>
    %c0_14 = arith.constant 0 : index
    %c0_15 = arith.constant 0 : index
    %18 = vector.load %arg7[%c0_14, %c0_15] : memref<1x20xf32, #tpu.memory_space<vmem>>, vector<1x20xf32>
    %19 = vector.broadcast %18 : vector<1x20xf32> to vector<16x20xf32>
    %20 = arith.addf %17, %19 : vector<16x20xf32>
    %21 = vector.extract_strided_slice %20 {offsets = [0, 0], sizes = [16, 16], strides = [1, 1]} : vector<16x20xf32> to vector<16x16xf32>
    %22 = math.tanh %21 : vector<16x16xf32>
    %23 = vector.extract_strided_slice %20 {offsets = [0, 16], sizes = [16, 4], strides = [1, 1]} : vector<16x20xf32> to vector<16x4xf32>
    %cst_16 = arith.constant dense<0xFF800000> : vector<16xf32>
    %24 = vector.multi_reduction <maximumf>, %23, %cst_16 [1] : vector<16x4xf32> to vector<16xf32>
    %25 = vector.shape_cast %24 : vector<16xf32> to vector<16x1xf32>
    %26 = vector.broadcast %25 : vector<16x1xf32> to vector<16x4xf32>
    %27 = arith.subf %23, %26 : vector<16x4xf32>
    %28 = math.exp %27 : vector<16x4xf32>
    %cst_17 = arith.constant dense<0.000000e+00> : vector<16xf32>
    %29 = vector.multi_reduction <add>, %28, %cst_17 [1] : vector<16x4xf32> to vector<16xf32>
    %30 = vector.shape_cast %29 : vector<16xf32> to vector<16x1xf32>
    %31 = math.log %30 : vector<16x1xf32>
    %32 = vector.broadcast %31 : vector<16x1xf32> to vector<16x4xf32>
    %33 = arith.subf %27, %32 : vector<16x4xf32>
    %c0_18 = arith.constant 0 : index
    %c0_19 = arith.constant 0 : index
    %34 = vector.load %arg15[%c0_18, %c0_19] : memref<16x4xf32, #tpu.memory_space<vmem>>, vector<16x4xf32>
    tpu.vector_store %arg15[%c0_18, %c0_19], %33 {strides = array<i32>} : memref<16x4xf32, #tpu.memory_space<vmem>>, vector<16x4xf32>,
    %35 = arith.truncf %22 : vector<16x16xf32> to vector<16x16xbf16>
    %c0_20 = arith.constant 0 : index
    %c0_21 = arith.constant 0 : index
    %36 = vector.load %arg8[%c0_20, %c0_21] : memref<16x20xbf16, #tpu.memory_space<vmem>>, vector<16x20xbf16>
    %cst_22 = arith.constant dense<0.000000e+00> : vector<16x20xf32>
    %37 = tpu.matmul %35, %36, %cst_22 {dimension_numbers = #tpu.dot_dimension_numbers<[1], [0], [0], [1], [0, 0, 1, 1], [], []>} : vector<16x16xbf16>, vector<16x20xbf16>, vector<16x20xf32> -> vector<16x20xf32>
    %c0_23 = arith.constant 0 : index
    %c0_24 = arith.constant 0 : index
    %38 = vector.load %arg9[%c0_23, %c0_24] : memref<1x20xf32, #tpu.memory_space<vmem>>, vector<1x20xf32>
    %39 = vector.broadcast %38 : vector<1x20xf32> to vector<16x20xf32>
    %40 = arith.addf %37, %39 : vector<16x20xf32>
    %cst_25 = arith.constant 0.000000e+00 : f32
    %41 = vector.broadcast %cst_25 : f32 to vector<16x20xf32>
    %42 = arith.maximumf %40, %41 : vector<16x20xf32>
    %43 = arith.truncf %42 : vector<16x20xf32> to vector<16x20xbf16>
    %c0_26 = arith.constant 0 : index
    %c0_27 = arith.constant 0 : index
    %44 = vector.load %arg10[%c0_26, %c0_27] : memref<20x42xbf16, #tpu.memory_space<vmem>>, vector<20x42xbf16>
    %cst_28 = arith.constant dense<0.000000e+00> : vector<16x42xf32>
    %45 = tpu.matmul %43, %44, %cst_28 {dimension_numbers = #tpu.dot_dimension_numbers<[1], [0], [0], [1], [0, 0, 1, 1], [], []>} : vector<16x20xbf16>, vector<20x42xbf16>, vector<16x42xf32> -> vector<16x42xf32>
    %c0_29 = arith.constant 0 : index
    %c0_30 = arith.constant 0 : index
    %46 = vector.load %arg11[%c0_29, %c0_30] : memref<1x42xf32, #tpu.memory_space<vmem>>, vector<1x42xf32>
    %47 = vector.broadcast %46 : vector<1x42xf32> to vector<16x42xf32>
    %48 = arith.addf %45, %47 : vector<16x42xf32>
    %cst_31 = arith.constant 0.000000e+00 : f32
    %49 = vector.broadcast %cst_31 : f32 to vector<16x42xf32>
    %50 = arith.maximumf %48, %49 : vector<16x42xf32>
    %51 = arith.truncf %50 : vector<16x42xf32> to vector<16x42xbf16>
    %c0_32 = arith.constant 0 : index
    %c0_33 = arith.constant 0 : index
    %52 = vector.load %arg12[%c0_32, %c0_33] : memref<42x128xbf16, #tpu.memory_space<vmem>>, vector<42x128xbf16>
    %cst_34 = arith.constant dense<0.000000e+00> : vector<16x128xf32>
    %53 = tpu.matmul %51, %52, %cst_34 {dimension_numbers = #tpu.dot_dimension_numbers<[1], [0], [0], [1], [0, 0, 1, 1], [], []>} : vector<16x42xbf16>, vector<42x128xbf16>, vector<16x128xf32> -> vector<16x128xf32>
    %c0_35 = arith.constant 0 : index
    %c0_36 = arith.constant 0 : index
    %54 = vector.load %arg13[%c0_35, %c0_36] : memref<1x128xf32, #tpu.memory_space<vmem>>, vector<1x128xf32>
    %55 = vector.broadcast %54 : vector<1x128xf32> to vector<16x128xf32>
    %56 = arith.addf %53, %55 : vector<16x128xf32>
    %57 = math.tanh %56 : vector<16x128xf32>
    %58 = arith.truncf %57 : vector<16x128xf32> to vector<16x128xbf16>
    %c0_37 = arith.constant 0 : index
    %c0_38 = arith.constant 0 : index
    %59 = vector.load %arg14[%c0_37, %c0_38] : memref<16x128xbf16, #tpu.memory_space<vmem>>, vector<16x128xbf16>
    tpu.vector_store %arg14[%c0_37, %c0_38], %58 {strides = array<i32>} : memref<16x128xbf16, #tpu.memory_space<vmem>>, vector<16x128xbf16>,
    return
  }
  func.func @transform_0(%arg0: i32) -> (i32, i32) {
    %c0_i32 = arith.constant 0 : i32
    %c0_i32_0 = arith.constant 0 : i32
    return %arg0, %c0_i32 : i32, i32
  }
  func.func @transform_1(%arg0: i32) -> (i32, i32) {
    %c0_i32 = arith.constant 0 : i32
    %c0_i32_0 = arith.constant 0 : i32
    %c0_i32_1 = arith.constant 0 : i32
    return %c0_i32, %c0_i32_0 : i32, i32
  }
  func.func @transform_2(%arg0: i32) -> (i32, i32) {
    %c0_i32 = arith.constant 0 : i32
    %c0_i32_0 = arith.constant 0 : i32
    %c0_i32_1 = arith.constant 0 : i32
    return %c0_i32, %c0_i32_0 : i32, i32
  }
  func.func @transform_3(%arg0: i32) -> (i32, i32) {
    %c0_i32 = arith.constant 0 : i32
    %c0_i32_0 = arith.constant 0 : i32
    %c0_i32_1 = arith.constant 0 : i32
    return %c0_i32, %c0_i32_0 : i32, i32
  }
  func.func @transform_4(%arg0: i32) -> (i32, i32) {
    %c0_i32 = arith.constant 0 : i32
    %c0_i32_0 = arith.constant 0 : i32
    %c0_i32_1 = arith.constant 0 : i32
    return %c0_i32, %c0_i32_0 : i32, i32
  }
  func.func @transform_5(%arg0: i32) -> (i32, i32) {
    %c0_i32 = arith.constant 0 : i32
    %c0_i32_0 = arith.constant 0 : i32
    %c0_i32_1 = arith.constant 0 : i32
    return %c0_i32, %c0_i32_0 : i32, i32
  }
  func.func @transform_6(%arg0: i32) -> (i32, i32) {
    %c0_i32 = arith.constant 0 : i32
    %c0_i32_0 = arith.constant 0 : i32
    %c0_i32_1 = arith.constant 0 : i32
    return %c0_i32, %c0_i32_0 : i32, i32
  }
  func.func @transform_7(%arg0: i32) -> (i32, i32) {
    %c0_i32 = arith.constant 0 : i32
    %c0_i32_0 = arith.constant 0 : i32
    %c0_i32_1 = arith.constant 0 : i32
    return %c0_i32, %c0_i32_0 : i32, i32
  }
  func.func @transform_8(%arg0: i32) -> (i32, i32) {
    %c0_i32 = arith.constant 0 : i32
    %c0_i32_0 = arith.constant 0 : i32
    %c0_i32_1 = arith.constant 0 : i32
    return %c0_i32, %c0_i32_0 : i32, i32
  }
  func.func @transform_9(%arg0: i32) -> (i32, i32) {
    %c0_i32 = arith.constant 0 : i32
    %c0_i32_0 = arith.constant 0 : i32
    %c0_i32_1 = arith.constant 0 : i32
    return %c0_i32, %c0_i32_0 : i32, i32
  }
  func.func @transform_10(%arg0: i32) -> (i32, i32) {
    %c0_i32 = arith.constant 0 : i32
    %c0_i32_0 = arith.constant 0 : i32
    %c0_i32_1 = arith.constant 0 : i32
    return %c0_i32, %c0_i32_0 : i32, i32
  }
  func.func @transform_11(%arg0: i32) -> (i32, i32) {
    %c0_i32 = arith.constant 0 : i32
    %c0_i32_0 = arith.constant 0 : i32
    %c0_i32_1 = arith.constant 0 : i32
    return %c0_i32, %c0_i32_0 : i32, i32
  }
  func.func @transform_12(%arg0: i32) -> (i32, i32) {
    %c0_i32 = arith.constant 0 : i32
    %c0_i32_0 = arith.constant 0 : i32
    %c0_i32_1 = arith.constant 0 : i32
    return %c0_i32, %c0_i32_0 : i32, i32
  }
  func.func @transform_13(%arg0: i32) -> (i32, i32) {
    %c0_i32 = arith.constant 0 : i32
    %c0_i32_0 = arith.constant 0 : i32
    return %arg0, %c0_i32 : i32, i32
  }
  func.func @transform_14(%arg0: i32) -> (i32, i32) {
    %c0_i32 = arith.constant 0 : i32
    %c0_i32_0 = arith.constant 0 : i32
    return %arg0, %c0_i32 : i32, i32
  }
}

</mosaic_0001>

<llo_original>
// kernel: tpu_custom_call.1
$region0: #{tpu_custom_call.1}
  #allocation0 [shape = 'u32[]', space=smem, size = 0x4, offset = 0x4, fixed_abs, tag = 'smem constant byte address 0x4 - core index']
  #allocation1 [shape = 'u32[144,128]{1,0:T(1,128)}', space=vmem, size = 0x12000, scoped, tag = 'internal scratch']
  %s0 = inlined_call_operand.vmem [shape: bf16[16,128], index: 0, kind: input, shape index: {}]
  %s1 = inlined_call_operand.vmem [shape: bf16[128,42], index: 1, kind: input, shape index: {}]
  %s2 = inlined_call_operand.vmem [shape: f32[1,42], index: 2, kind: input, shape index: {}]
  %s3 = inlined_call_operand.vmem [shape: bf16[42,20], index: 3, kind: input, shape index: {}]
  %s4 = inlined_call_operand.vmem [shape: f32[1,20], index: 4, kind: input, shape index: {}]
  %s5 = inlined_call_operand.vmem [shape: bf16[20,20], index: 5, kind: input, shape index: {}]
  %s6 = inlined_call_operand.vmem [shape: f32[1,20], index: 6, kind: input, shape index: {}]
  %s7 = inlined_call_operand.vmem [shape: bf16[16,20], index: 7, kind: input, shape index: {}]
  %s8 = inlined_call_operand.vmem [shape: f32[1,20], index: 8, kind: input, shape index: {}]
  %s9 = inlined_call_operand.vmem [shape: bf16[20,42], index: 9, kind: input, shape index: {}]
  %s10 = inlined_call_operand.vmem [shape: f32[1,42], index: 10, kind: input, shape index: {}]
  %s11 = inlined_call_operand.vmem [shape: bf16[42,128], index: 11, kind: input, shape index: {}]
  %s12 = inlined_call_operand.vmem [shape: f32[1,128], index: 12, kind: input, shape index: {}]
  %s13 = inlined_call_operand.hbm [shape: bf16[16,128], index: 13, kind: output, shape index: {0}]
  %s14 = inlined_call_operand.vmem [shape: f32[16,4], index: 14, kind: output, shape index: {1}]
  %15 = xla_tuple %s13, %s14
  %s16 = sld [smem:[#allocation0]]
  $region70: #{tpu_custom_call.1} parent=0
    _
  %s18 = ssub.s32 1, %s16
  %s19 = scalar_select 0, %s18, %s16
  $region1: #{tpu_custom_call.1} parent=0
    #allocation2 [shape = 'u8[4096]{0}', space=vmem, size = 0x1000, scoped, tag = 'output window, operand 0, single buffered']
    #allocation3 [shape = 's32[1]{0}', space=sflag, size = 0x4, scoped, tag = 'scoped memory for tpu_custom_call.1']
    %20 = vsyncpa [#allocation3], 0
    // Predicated region
    $region2: #{tpu_custom_call.1} parent=1 // pred_check
      _
    $region3: #{tpu_custom_call.1} parent=1 // pred_check_branch
      %22 = sbr.rel (0) target = $region5
    $region4: #{tpu_custom_call.1} parent=1 // pred_region
      _
    $region5: #{tpu_custom_call.1} parent=1 // pred_fallthru
      _
    // Predicated region
    $region6: #{tpu_custom_call.1} parent=1 // pred_check
      _
    $region7: #{tpu_custom_call.1} parent=1 // pred_check_branch
      %24 = sbr.rel (0) target = $region9
    $region8: #{tpu_custom_call.1} parent=1 // pred_region
      _
    $region9: #{tpu_custom_call.1} parent=1 // pred_fallthru
      _
    // Predicated region
    $region10: #{tpu_custom_call.1} parent=1 // pred_check
      _
    $region11: #{tpu_custom_call.1} parent=1 // pred_check_branch
      %26 = sbr.rel (0) target = $region13
    $region12: #{tpu_custom_call.1} parent=1 // pred_region
      _
    $region13: #{tpu_custom_call.1} parent=1 // pred_fallthru
      _
    // Predicated region
    $region14: #{tpu_custom_call.1} parent=1 // pred_check
      _
    $region15: #{tpu_custom_call.1} parent=1 // pred_check_branch
      %28 = sbr.rel (0) target = $region17
    $region16: #{tpu_custom_call.1} parent=1 // pred_region
      _
    $region17: #{tpu_custom_call.1} parent=1 // pred_fallthru
      _
    // Predicated region
    $region18: #{tpu_custom_call.1} parent=1 // pred_check
      _
    $region19: #{tpu_custom_call.1} parent=1 // pred_check_branch
      %30 = sbr.rel (0) target = $region21
    $region20: #{tpu_custom_call.1} parent=1 // pred_region
      _
    $region21: #{tpu_custom_call.1} parent=1 // pred_fallthru
      _
    // Predicated region
    $region22: #{tpu_custom_call.1} parent=1 // pred_check
      _
    $region23: #{tpu_custom_call.1} parent=1 // pred_check_branch
      %32 = sbr.rel (0) target = $region25
    $region24: #{tpu_custom_call.1} parent=1 // pred_region
      _
    $region25: #{tpu_custom_call.1} parent=1 // pred_fallthru
      _
    // Predicated region
    $region26: #{tpu_custom_call.1} parent=1 // pred_check
      _
    $region27: #{tpu_custom_call.1} parent=1 // pred_check_branch
      %34 = sbr.rel (0) target = $region29
    $region28: #{tpu_custom_call.1} parent=1 // pred_region
      _
    $region29: #{tpu_custom_call.1} parent=1 // pred_fallthru
      _
    // Predicated region
    $region30: #{tpu_custom_call.1} parent=1 // pred_check
      _
    $region31: #{tpu_custom_call.1} parent=1 // pred_check_branch
      %36 = sbr.rel (0) target = $region33
    $region32: #{tpu_custom_call.1} parent=1 // pred_region
      _
    $region33: #{tpu_custom_call.1} parent=1 // pred_fallthru
      _
    // Predicated region
    $region34: #{tpu_custom_call.1} parent=1 // pred_check
      _
    $region35: #{tpu_custom_call.1} parent=1 // pred_check_branch
      %38 = sbr.rel (0) target = $region37
    $region36: #{tpu_custom_call.1} parent=1 // pred_region
      _
    $region37: #{tpu_custom_call.1} parent=1 // pred_fallthru
      _
    // Predicated region
    $region38: #{tpu_custom_call.1} parent=1 // pred_check
      _
    $region39: #{tpu_custom_call.1} parent=1 // pred_check_branch
      %40 = sbr.rel (0) target = $region41
    $region40: #{tpu_custom_call.1} parent=1 // pred_region
      _
    $region41: #{tpu_custom_call.1} parent=1 // pred_fallthru
      _
    // Predicated region
    $region42: #{tpu_custom_call.1} parent=1 // pred_check
      _
    $region43: #{tpu_custom_call.1} parent=1 // pred_check_branch
      %42 = sbr.rel (0) target = $region45
    $region44: #{tpu_custom_call.1} parent=1 // pred_region
      _
    $region45: #{tpu_custom_call.1} parent=1 // pred_fallthru
      _
    // Predicated region
    $region46: #{tpu_custom_call.1} parent=1 // pred_check
      _
    $region47: #{tpu_custom_call.1} parent=1 // pred_check_branch
      %44 = sbr.rel (0) target = $region49
    $region48: #{tpu_custom_call.1} parent=1 // pred_region
      _
    $region49: #{tpu_custom_call.1} parent=1 // pred_fallthru
      _
    // Predicated region
    $region50: #{tpu_custom_call.1} parent=1 // pred_check
      _
    $region51: #{tpu_custom_call.1} parent=1 // pred_check_branch
      %46 = sbr.rel (0) target = $region53
    $region52: #{tpu_custom_call.1} parent=1 // pred_region
      _
    $region53: #{tpu_custom_call.1} parent=1 // pred_fallthru
      _
    %v48 = vld [vmem:[%s0] sm:$0xf]
    %v49 = vld [vmem:[%s0 + $0x4] sm:$0xf]
    %v50 = vld [vmem:[%s1] sm:$0xf]
    %v51 = vld [vmem:[%s1 + $0x4] sm:$0xf]
    %v52 = vld [vmem:[%s1 + $0x8] sm:$0xf]
    %v53 = vld [vmem:[%s1 + $0xc] sm:$0xf]
    %v54 = vld [vmem:[%s1 + $0x10] sm:$0xf]
    %v55 = vld [vmem:[%s1 + $0x14] sm:$0xf]
    %v56 = vld [vmem:[%s1 + $0x18] sm:$0xf]
    %v57 = vld [vmem:[%s1 + $0x1c] sm:$0xf]
    %v58 = vld [vmem:[%s1 + $0x20] sm:$0xf]
    %v59 = vld [vmem:[%s1 + $0x24] sm:$0xf]
    %v60 = vld [vmem:[%s1 + $0x28] sm:$0xf]
    %v61 = vld [vmem:[%s1 + $0x2c] sm:$0xf]
    %v62 = vld [vmem:[%s1 + $0x30] sm:$0xf]
    %v63 = vld [vmem:[%s1 + $0x34] sm:$0xf]
    %v64 = vld [vmem:[%s1 + $0x38] sm:$0xf]
    %v65 = vld [vmem:[%s1 + $0x3c] sm:$0xf]
    %v66 = vld [vmem:[%s2] sm:$0x1]
    %v68 = vlaneseq
    %v69 = vshrl.u32 %v68, 7
    %v70 = vsub.s32 0, %v69
    %v71 = vrot.slane %v66, %v70
    %v75 = vunpack.c.l.b16 %v48
    %v76 = vunpack.c.l.b16 %v49
    %v77 = vpack.c.b16 %v76, %v75
    %v95 = vunpack.c.l.b16 %v50
    %v96 = vunpack.c.l.b16 %v51
    %v97 = vunpack.c.l.b16 %v52
    %v98 = vunpack.c.l.b16 %v53
    %v99 = vunpack.c.l.b16 %v54
    %v100 = vunpack.c.l.b16 %v55
    %v101 = vunpack.c.l.b16 %v56
    %v102 = vunpack.c.l.b16 %v57
    %v103 = vunpack.c.l.b16 %v58
    %v104 = vunpack.c.l.b16 %v59
    %v105 = vunpack.c.l.b16 %v60
    %v106 = vunpack.c.l.b16 %v61
    %v107 = vunpack.c.l.b16 %v62
    %v108 = vunpack.c.l.b16 %v63
    %v109 = vunpack.c.l.b16 %v64
    %v110 = vunpack.c.l.b16 %v65
    %v111 = vpack.c.b16 %v96, %v95
    %v112 = vpack.c.b16 %v98, %v97
    %v113 = vpack.c.b16 %v100, %v99
    %v114 = vpack.c.b16 %v102, %v101
    %v115 = vpack.c.b16 %v104, %v103
    %v116 = vpack.c.b16 %v106, %v105
    %v117 = vpack.c.b16 %v108, %v107
    %v118 = vpack.c.b16 %v110, %v109
    %127 = vmatprep.subr.bf16.mxu0 0
    %128 = vmatpush1.bf16.msra.mxu0 %v111
    %129 = vmatprep.subr.bf16.mxu0 0
    %130 = vmatpush1.bf16.msra.mxu0 %v112
    %131 = vmatprep.subr.bf16.mxu0 0
    %132 = vmatpush1.bf16.msra.mxu0 %v113
    %133 = vmatprep.subr.bf16.mxu0 0
    %134 = vmatpush1.bf16.msra.mxu0 %v114
    %135 = vmatprep.subr.bf16.mxu0 0
    %136 = vmatpush1.bf16.msra.mxu0 %v115
    %137 = vmatprep.subr.bf16.mxu0 0
    %138 = vmatpush1.bf16.msra.mxu0 %v116
    %139 = vmatprep.subr.bf16.mxu0 0
    %140 = vmatpush1.bf16.msra.mxu0 %v117
    %141 = vmatprep.subr.bf16.mxu0 0
    %142 = vmatpush1.bf16.msra.mxu0 %v118
    %143 = vmatprep.subr.bf16.mxu0 0
    %144 = vmatpush1.bf16.msra.mxu0 0
    %145 = vmatprep.subr.bf16.mxu0 0
    %146 = vmatpush1.bf16.msra.mxu0 0
    %147 = vmatprep.subr.bf16.mxu0 0
    %148 = vmatpush1.bf16.msra.mxu0 0
    %149 = vmatprep.subr.bf16.mxu0 0
    %150 = vmatpush1.bf16.msra.mxu0 0
    %151 = vmatprep.subr.bf16.mxu0 0
    %152 = vmatpush1.bf16.msra.mxu0 0
    %153 = vmatprep.subr.bf16.mxu0 0
    %154 = vmatpush1.bf16.msra.mxu0 0
    %155 = vmatprep.subr.bf16.mxu0 0
    %156 = vmatpush1.bf16.msra.mxu0 0
    %157 = vmatprep.subr.bf16.mxu0 0
    %158 = vmatpush1.bf16.msra.mxu0 0
    %159 = vmatprep.mubr.bf16.mxu0 0
    %160 = vmatmul.mubr.bf16.gmra.mrb[0].mxu0 %v77
    %v161 = vpop.f32.mrb[0].mxu0
    %v162 = vadd.f32 %v71, %v161
    %v163 = vpop.f32.mrb[0].mxu0
    %v164 = vpop.f32.mrb[0].mxu0
    %v165 = vadd.f32 %v71, %v164
    %v166 = vpop.f32.mrb[0].mxu0
    %167 = vdwg.mxu0
    %v168 = vmax.f32 %v162, 0.0
    %v169 = vmax.f32 %v165, 0.0
    %v170 = vpack.c.bf16 %v169, %v168
    %v171 = vld [vmem:[%s3] sm:$0xf]
    %v172 = vld [vmem:[%s3 + $0x4] sm:$0xf]
    %v173 = vld [vmem:[%s3 + $0x8] sm:$0xf]
    %v174 = vld [vmem:[%s3 + $0xc] sm:$0xf]
    %v175 = vld [vmem:[%s3 + $0x10] sm:$0xf]
    %v176 = vld [vmem:[%s3 + $0x14] sm:$0x1]
    %v177 = vld [vmem:[%s4] sm:$0x1]
    %v179 = vlaneseq
    %v180 = vshrl.u32 %v179, 7
    %v181 = vsub.s32 0, %v180
    %v182 = vrot.slane %v177, %v181
    %v190 = vunpack.c.l.b16 %v171
    %v191 = vunpack.c.l.b16 %v172
    %v192 = vunpack.c.l.b16 %v173
    %v193 = vunpack.c.l.b16 %v174
    %v194 = vunpack.c.l.b16 %v175
    %v195 = vunpack.c.l.b16 %v176
    %v196 = vpack.c.b16 %v191, %v190
    %v197 = vpack.c.b16 %v193, %v192
    %v198 = vpack.c.b16 %v195, %v194
    %vm201 = vcmask 343040
    %v203 = vsel %vm201, %v170, 0
    %vm205 = vcmask 1044480
    %v207 = vsel %vm205, %v198, 0
    %209 = vmatprep.subr.bf16.mxu0 0
    %210 = vmatpush1.bf16.msra.mxu0 %v196
    %211 = vmatprep.subr.bf16.mxu0 0
    %212 = vmatpush1.bf16.msra.mxu0 %v197
    %213 = vmatprep.subr.bf16.mxu0 0
    %214 = vmatpush1.bf16.msra.mxu0 %v207
    %215 = vmatprep.subr.bf16.mxu0 0
    %216 = vmatpush1.bf16.msra.mxu0 0
    %217 = vmatprep.subr.bf16.mxu0 0
    %218 = vmatpush1.bf16.msra.mxu0 0
    %219 = vmatprep.subr.bf16.mxu0 0
    %220 = vmatpush1.bf16.msra.mxu0 0
    %221 = vmatprep.subr.bf16.mxu0 0
    %222 = vmatpush1.bf16.msra.mxu0 0
    %223 = vmatprep.subr.bf16.mxu0 0
    %224 = vmatpush1.bf16.msra.mxu0 0
    %225 = vmatprep.subr.bf16.mxu0 0
    %226 = vmatpush1.bf16.msra.mxu0 0
    %227 = vmatprep.subr.bf16.mxu0 0
    %228 = vmatpush1.bf16.msra.mxu0 0
    %229 = vmatprep.subr.bf16.mxu0 0
    %230 = vmatpush1.bf16.msra.mxu0 0
    %231 = vmatprep.subr.bf16.mxu0 0
    %232 = vmatpush1.bf16.msra.mxu0 0
    %233 = vmatprep.subr.bf16.mxu0 0
    %234 = vmatpush1.bf16.msra.mxu0 0
    %235 = vmatprep.subr.bf16.mxu0 0
    %236 = vmatpush1.bf16.msra.mxu0 0
    %237 = vmatprep.subr.bf16.mxu0 0
    %238 = vmatpush1.bf16.msra.mxu0 0
    %239 = vmatprep.subr.bf16.mxu0 0
    %240 = vmatpush1.bf16.msra.mxu0 0
    %241 = vmatprep.mubr.bf16.mxu0 0
    %242 = vmatmul.mubr.bf16.gmra.mrb[0].mxu0 %v203
    %v243 = vpop.f32.mrb[0].mxu0
    %v244 = vadd.f32 %v182, %v243
    %v245 = vpop.f32.mrb[0].mxu0
    %v246 = vpop.f32.mrb[0].mxu0
    %v247 = vadd.f32 %v182, %v246
    %v248 = vpop.f32.mrb[0].mxu0
    %249 = vdwg.mxu0
    %v250 = vtanh.pop %v244
    %v251 = vtanh.pop %v247
    %v252 = vpack.c.bf16 %v251, %v250
    %v253 = vld [vmem:[%s5] sm:$0xf]
    %v254 = vld [vmem:[%s5 + $0x4] sm:$0xf]
    %v255 = vld [vmem:[%s5 + $0x8] sm:$0x3]
    %v256 = vld [vmem:[%s6] sm:$0x1]
    %v258 = vlaneseq
    %v259 = vshrl.u32 %v258, 7
    %v260 = vsub.s32 0, %v259
    %v261 = vrot.slane %v256, %v260
    %v266 = vunpack.c.l.b16 %v253
    %v267 = vunpack.c.l.b16 %v254
    %v268 = vunpack.c.l.b16 %v255
    %v269 = vpack.c.b16 %v267, %v266
    %v270 = vpack.c.b16 %v268, %v268
    %vm272 = vcmask 162816
    %v274 = vsel %vm272, %v252, 0
    %vm276 = vcmask 1041408
    %v278 = vsel %vm276, %v270, 0
    %280 = vmatprep.subr.bf16.mxu0 0
    %281 = vmatpush1.bf16.msra.mxu0 %v269
    %282 = vmatprep.subr.bf16.mxu0 0
    %283 = vmatpush1.bf16.msra.mxu0 %v278
    %284 = vmatprep.subr.bf16.mxu0 0
    %285 = vmatpush1.bf16.msra.mxu0 0
    %286 = vmatprep.subr.bf16.mxu0 0
    %287 = vmatpush1.bf16.msra.mxu0 0
    %288 = vmatprep.subr.bf16.mxu0 0
    %289 = vmatpush1.bf16.msra.mxu0 0
    %290 = vmatprep.subr.bf16.mxu0 0
    %291 = vmatpush1.bf16.msra.mxu0 0
    %292 = vmatprep.subr.bf16.mxu0 0
    %293 = vmatpush1.bf16.msra.mxu0 0
    %294 = vmatprep.subr.bf16.mxu0 0
    %295 = vmatpush1.bf16.msra.mxu0 0
    %296 = vmatprep.subr.bf16.mxu0 0
    %297 = vmatpush1.bf16.msra.mxu0 0
    %298 = vmatprep.subr.bf16.mxu0 0
    %299 = vmatpush1.bf16.msra.mxu0 0
    %300 = vmatprep.subr.bf16.mxu0 0
    %301 = vmatpush1.bf16.msra.mxu0 0
    %302 = vmatprep.subr.bf16.mxu0 0
    %303 = vmatpush1.bf16.msra.mxu0 0
    %304 = vmatprep.subr.bf16.mxu0 0
    %305 = vmatpush1.bf16.msra.mxu0 0
    %306 = vmatprep.subr.bf16.mxu0 0
    %307 = vmatpush1.bf16.msra.mxu0 0
    %308 = vmatprep.subr.bf16.mxu0 0
    %309 = vmatpush1.bf16.msra.mxu0 0
    %310 = vmatprep.subr.bf16.mxu0 0
    %311 = vmatpush1.bf16.msra.mxu0 0
    %312 = vmatprep.mubr.bf16.mxu0 0
    %313 = vmatmul.mubr.bf16.gmra.mrb[0].mxu0 %v274
    %v314 = vpop.f32.mrb[0].mxu0
    %v315 = vadd.f32 %v261, %v314
    %v316 = vpop.f32.mrb[0].mxu0
    %v317 = vpop.f32.mrb[0].mxu0
    %v318 = vadd.f32 %v261, %v317
    %v319 = vpop.f32.mrb[0].mxu0
    %320 = vdwg.mxu0
    %v321 = vtanh.pop %v315
    %v322 = vtanh.pop %v318
    %vm323 = vcmask 162944
    %v324 = vsel %vm323, %v315, -inf
    %325 = vmax.xlane.f32.xlu0 %v324
    %v326 = vpop.xlane.xlu0 %325
    %v327 = vsel %vm323, %v318, -inf
    %328 = vmax.xlane.f32.xlu0 %v327
    %v329 = vpop.xlane.xlu0 %328
    %v330 = vsub.f32 %v315, %v326
    %v331 = vsub.f32 %v318, %v329
    %v332 = vmul.f32 %v330, 1.442695
    %v333 = vpow.pop %v332
    %v334 = vmul.f32 %v331, 1.442695
    %v335 = vpow.pop %v334
    %338 = vrot.lane.b32.xlu0 %v333, 112
    %v339 = vpop.permute.xlu0 %338
    %340 = vrot.lane.b32.xlu0 %v335, 112
    %v341 = vpop.permute.xlu0 %340
    %vm344 = vcmask 31744
    %v345 = vsel %vm344, %v339, 0.0
    %346 = vadd.xlane.f32.xlu0 %v345
    %v347 = vpop.xlane.xlu0 %346
    %v348 = vsel %vm344, %v341, 0.0
    %349 = vadd.xlane.f32.xlu0 %v348
    %v350 = vpop.xlane.xlu0 %349
    %v351 = vlog2.pop %v347
    %v352 = vmul.f32 %v351, 0.6931472
    %v353 = vlog2.pop %v350
    %v354 = vmul.f32 %v353, 0.6931472
    %v355 = vsub.f32 %v330, %v352
    %v356 = vsub.f32 %v331, %v354
    %359 = vrot.lane.b32.xlu0 %v355, 112
    %v360 = vpop.permute.xlu0 %359
    %361 = vrot.lane.b32.xlu0 %v356, 112
    %v362 = vpop.permute.xlu0 %361
    %365 = vst.msk [vmem:[%s14] sm:$0xff] %vm344, %v360
    %366 = vst.msk [vmem:[%s14 + $0x8] sm:$0xff] %vm344, %v362
    %v367 = vpack.c.bf16 %v322, %v321
    %v368 = vld [vmem:[%s7] sm:$0xf]
    %v369 = vld [vmem:[%s7 + $0x4] sm:$0xf]
    %v370 = vld [vmem:[%s8] sm:$0x1]
    %v372 = vlaneseq
    %v373 = vshrl.u32 %v372, 7
    %v374 = vsub.s32 0, %v373
    %v375 = vrot.slane %v370, %v374
    %v379 = vunpack.c.l.b16 %v368
    %v380 = vunpack.c.l.b16 %v369
    %v381 = vpack.c.b16 %v380, %v379
    %vm383 = vcmask 130048
    %v385 = vsel %vm383, %v367, 0
    %387 = vmatprep.subr.bf16.mxu0 0
    %388 = vmatpush1.bf16.msra.mxu0 %v381
    %389 = vmatprep.subr.bf16.mxu0 0
    %390 = vmatpush1.bf16.msra.mxu0 0
    %391 = vmatprep.subr.bf16.mxu0 0
    %392 = vmatpush1.bf16.msra.mxu0 0
    %393 = vmatprep.subr.bf16.mxu0 0
    %394 = vmatpush1.bf16.msra.mxu0 0
    %395 = vmatprep.subr.bf16.mxu0 0
    %396 = vmatpush1.bf16.msra.mxu0 0
    %397 = vmatprep.subr.bf16.mxu0 0
    %398 = vmatpush1.bf16.msra.mxu0 0
    %399 = vmatprep.subr.bf16.mxu0 0
    %400 = vmatpush1.bf16.msra.mxu0 0
    %401 = vmatprep.subr.bf16.mxu0 0
    %402 = vmatpush1.bf16.msra.mxu0 0
    %403 = vmatprep.subr.bf16.mxu0 0
    %404 = vmatpush1.bf16.msra.mxu0 0
    %405 = vmatprep.subr.bf16.mxu0 0
    %406 = vmatpush1.bf16.msra.mxu0 0
    %407 = vmatprep.subr.bf16.mxu0 0
    %408 = vmatpush1.bf16.msra.mxu0 0
    %409 = vmatprep.subr.bf16.mxu0 0
    %410 = vmatpush1.bf16.msra.mxu0 0
    %411 = vmatprep.subr.bf16.mxu0 0
    %412 = vmatpush1.bf16.msra.mxu0 0
    %413 = vmatprep.subr.bf16.mxu0 0
    %414 = vmatpush1.bf16.msra.mxu0 0
    %415 = vmatprep.subr.bf16.mxu0 0
    %416 = vmatpush1.bf16.msra.mxu0 0
    %417 = vmatprep.subr.bf16.mxu0 0
    %418 = vmatpush1.bf16.msra.mxu0 0
    %419 = vmatprep.mubr.bf16.mxu0 0
    %420 = vmatmul.mubr.bf16.gmra.mrb[0].mxu0 %v385
    %v421 = vpop.f32.mrb[0].mxu0
    %v422 = vadd.f32 %v375, %v421
    %v423 = vpop.f32.mrb[0].mxu0
    %v424 = vpop.f32.mrb[0].mxu0
    %v425 = vadd.f32 %v375, %v424
    %v426 = vpop.f32.mrb[0].mxu0
    %427 = vdwg.mxu0
    %v428 = vmax.f32 %v422, 0.0
    %v429 = vmax.f32 %v425, 0.0
    %v430 = vpack.c.bf16 %v429, %v428
    %v431 = vld [vmem:[%s9] sm:$0xf]
    %v432 = vld [vmem:[%s9 + $0x4] sm:$0xf]
    %v433 = vld [vmem:[%s9 + $0x8] sm:$0x3]
    %v434 = vld [vmem:[%s10] sm:$0x1]
    %v436 = vlaneseq
    %v437 = vshrl.u32 %v436, 7
    %v438 = vsub.s32 0, %v437
    %v439 = vrot.slane %v434, %v438
    %v444 = vunpack.c.l.b16 %v431
    %v445 = vunpack.c.l.b16 %v432
    %v446 = vunpack.c.l.b16 %v433
    %v447 = vpack.c.b16 %v445, %v444
    %v448 = vpack.c.b16 %v446, %v446
    %v451 = vsel %vm272, %v430, 0
    %v454 = vsel %vm276, %v448, 0
    %456 = vmatprep.subr.bf16.mxu0 0
    %457 = vmatpush1.bf16.msra.mxu0 %v447
    %458 = vmatprep.subr.bf16.mxu0 0
    %459 = vmatpush1.bf16.msra.mxu0 %v454
    %460 = vmatprep.subr.bf16.mxu0 0
    %461 = vmatpush1.bf16.msra.mxu0 0
    %462 = vmatprep.subr.bf16.mxu0 0
    %463 = vmatpush1.bf16.msra.mxu0 0
    %464 = vmatprep.subr.bf16.mxu0 0
    %465 = vmatpush1.bf16.msra.mxu0 0
    %466 = vmatprep.subr.bf16.mxu0 0
    %467 = vmatpush1.bf16.msra.mxu0 0
    %468 = vmatprep.subr.bf16.mxu0 0
    %469 = vmatpush1.bf16.msra.mxu0 0
    %470 = vmatprep.subr.bf16.mxu0 0
    %471 = vmatpush1.bf16.msra.mxu0 0
    %472 = vmatprep.subr.bf16.mxu0 0
    %473 = vmatpush1.bf16.msra.mxu0 0
    %474 = vmatprep.subr.bf16.mxu0 0
    %475 = vmatpush1.bf16.msra.mxu0 0
    %476 = vmatprep.subr.bf16.mxu0 0
    %477 = vmatpush1.bf16.msra.mxu0 0
    %478 = vmatprep.subr.bf16.mxu0 0
    %479 = vmatpush1.bf16.msra.mxu0 0
    %480 = vmatprep.subr.bf16.mxu0 0
    %481 = vmatpush1.bf16.msra.mxu0 0
    %482 = vmatprep.subr.bf16.mxu0 0
    %483 = vmatpush1.bf16.msra.mxu0 0
    %484 = vmatprep.subr.bf16.mxu0 0
    %485 = vmatpush1.bf16.msra.mxu0 0
    %486 = vmatprep.subr.bf16.mxu0 0
    %487 = vmatpush1.bf16.msra.mxu0 0
    %488 = vmatprep.mubr.bf16.mxu0 0
    %489 = vmatmul.mubr.bf16.gmra.mrb[0].mxu0 %v451
    %v490 = vpop.f32.mrb[0].mxu0
    %v491 = vadd.f32 %v439, %v490
    %v492 = vpop.f32.mrb[0].mxu0
    %v493 = vpop.f32.mrb[0].mxu0
    %v494 = vadd.f32 %v439, %v493
    %v495 = vpop.f32.mrb[0].mxu0
    %496 = vdwg.mxu0
    %v497 = vmax.f32 %v491, 0.0
    %v498 = vmax.f32 %v494, 0.0
    %v499 = vpack.c.bf16 %v498, %v497
    %v500 = vld [vmem:[%s11] sm:$0xf]
    %v501 = vld [vmem:[%s11 + $0x4] sm:$0xf]
    %v502 = vld [vmem:[%s11 + $0x8] sm:$0xf]
    %v503 = vld [vmem:[%s11 + $0xc] sm:$0xf]
    %v504 = vld [vmem:[%s11 + $0x10] sm:$0xf]
    %v505 = vld [vmem:[%s11 + $0x14] sm:$0x1]
    %v506 = vld [vmem:[%s12] sm:$0x1]
    %v508 = vlaneseq
    %v509 = vshrl.u32 %v508, 7
    %v510 = vsub.s32 0, %v509
    %v511 = vrot.slane %v506, %v510
    %v519 = vunpack.c.l.b16 %v500
    %v520 = vunpack.c.l.b16 %v501
    %v521 = vunpack.c.l.b16 %v502
    %v522 = vunpack.c.l.b16 %v503
    %v523 = vunpack.c.l.b16 %v504
    %v524 = vunpack.c.l.b16 %v505
    %v525 = vpack.c.b16 %v520, %v519
    %v526 = vpack.c.b16 %v522, %v521
    %v527 = vpack.c.b16 %v524, %v523
    %v531 = vsel %vm201, %v499, 0
    %v534 = vsel %vm205, %v527, 0
    %536 = vmatprep.subr.bf16.mxu0 0
    %537 = vmatpush1.bf16.msra.mxu0 %v525
    %538 = vmatprep.subr.bf16.mxu0 0
    %539 = vmatpush1.bf16.msra.mxu0 %v526
    %540 = vmatprep.subr.bf16.mxu0 0
    %541 = vmatpush1.bf16.msra.mxu0 %v534
    %542 = vmatprep.subr.bf16.mxu0 0
    %543 = vmatpush1.bf16.msra.mxu0 0
    %544 = vmatprep.subr.bf16.mxu0 0
    %545 = vmatpush1.bf16.msra.mxu0 0
    %546 = vmatprep.subr.bf16.mxu0 0
    %547 = vmatpush1.bf16.msra.mxu0 0
    %548 = vmatprep.subr.bf16.mxu0 0
    %549 = vmatpush1.bf16.msra.mxu0 0
    %550 = vmatprep.subr.bf16.mxu0 0
    %551 = vmatpush1.bf16.msra.mxu0 0
    %552 = vmatprep.subr.bf16.mxu0 0
    %553 = vmatpush1.bf16.msra.mxu0 0
    %554 = vmatprep.subr.bf16.mxu0 0
    %555 = vmatpush1.bf16.msra.mxu0 0
    %556 = vmatprep.subr.bf16.mxu0 0
    %557 = vmatpush1.bf16.msra.mxu0 0
    %558 = vmatprep.subr.bf16.mxu0 0
    %559 = vmatpush1.bf16.msra.mxu0 0
    %560 = vmatprep.subr.bf16.mxu0 0
    %561 = vmatpush1.bf16.msra.mxu0 0
    %562 = vmatprep.subr.bf16.mxu0 0
    %563 = vmatpush1.bf16.msra.mxu0 0
    %564 = vmatprep.subr.bf16.mxu0 0
    %565 = vmatpush1.bf16.msra.mxu0 0
    %566 = vmatprep.subr.bf16.mxu0 0
    %567 = vmatpush1.bf16.msra.mxu0 0
    %568 = vmatprep.mubr.bf16.mxu0 0
    %569 = vmatmul.mubr.bf16.gmra.mrb[0].mxu0 %v531
    %v570 = vpop.f32.mrb[0].mxu0
    %v571 = vadd.f32 %v511, %v570
    %v572 = vpop.f32.mrb[0].mxu0
    %v573 = vpop.f32.mrb[0].mxu0
    %v574 = vadd.f32 %v511, %v573
    %v575 = vpop.f32.mrb[0].mxu0
    %576 = vdwg.mxu0
    %v577 = vtanh.pop %v571
    %v578 = vtanh.pop %v574
    %v579 = vpack.c.bf16 %v578, %v577
    %v581 = vunpack.c.l.b16 %v579
    %v582 = vunpack.c.h.b16 %v579
    %v583 = vpack.c.b16 %v581, %v581
    %v584 = vpack.c.b16 %v582, %v582
    %587 = vst [vmem:[#allocation2] sm:$0xf] %v583
    %588 = vst [vmem:[#allocation2 + $0x4] sm:$0xf] %v584
    // Predicated region
    $region54: #{tpu_custom_call.1} parent=1 // pred_check
      _
    $region55: #{tpu_custom_call.1} parent=1 // pred_check_branch
      %590 = sbr.rel (0) target = $region57
    $region56: #{tpu_custom_call.1} parent=1 // pred_region
      %s592 = ssub.s32 128, 128
      %593 = vsyncadd [#allocation3], %s592
      %s594 = sshll.u32 [#allocation2], 4
      %s595 = int_to_ptr.vmem [resolvable:$true] %s594
      %600 = dma.vmem_to_hbm [thread:$0]  %s595, 128, %s13, [#allocation3], 64, 64, 4
    $region57: #{tpu_custom_call.1} parent=1 // pred_fallthru
      _
    // Predicated region
    $region58: #{tpu_custom_call.1} parent=1 // pred_check
      _
    $region59: #{tpu_custom_call.1} parent=1 // pred_check_branch
      %602 = sbr.rel (0) target = $region61
    $region60: #{tpu_custom_call.1} parent=1 // pred_region
      _
    $region61: #{tpu_custom_call.1} parent=1 // pred_fallthru
      _
    // Predicated region
    $region62: #{tpu_custom_call.1} parent=1 // pred_check
      _
    $region63: #{tpu_custom_call.1} parent=1 // pred_check_branch
      %604 = sbr.rel (0) target = $region65
    $region64: #{tpu_custom_call.1} parent=1 // pred_region
      %605 = dma.done [#allocation3], 128
    $region65: #{tpu_custom_call.1} parent=1 // pred_fallthru
      _
    // Predicated region
    $region66: #{tpu_custom_call.1} parent=1 // pred_check
      _
    $region67: #{tpu_custom_call.1} parent=1 // pred_check_branch
      %607 = sbr.rel (0) target = $region69
    $region68: #{tpu_custom_call.1} parent=1 // pred_region
      _
    $region69: #{tpu_custom_call.1} parent=1 // pred_fallthru
      _
    %608 = vsyncpa [#allocation3], 1

</llo_original>
